<compile_context>
chip_gen: v6e
topology: v6e:2x2x1
jax: 0.10.0
libtpu: 0.0.40
codegen_flags: <defaults>
</compile_context>

<pallas_src>
import functools

import jax
import jax.numpy as jnp
from jax.experimental import pallas as pl
from jax.experimental.pallas import tpu as pltpu


def _round_up(x, m):
    return (x + m - 1) // m * m


# Conservative budgets so the same plan fits v7x (64 MiB physical VMEM) as well
# as v5e/v6e (128 MiB).
_VMEM_BUDGET = 40 << 20
_VMEM_LIMIT = 48 << 20


# ------------------------------- kernels ------------------------------------


def _gcn_fused_kernel(adj_ref, w1_ref, b1_ref, w2_ref, b2_ref, out_ref, g_ref):
    # One branch per grid step: out = A @ (relu(A @ W1 + b1) @ W2) + b2.
    adj = adj_ref[0]                                               # (Np, Np) bf16
    h = jnp.maximum(
        jnp.dot(adj, w1_ref[...], preferred_element_type=jnp.float32)
        + b1_ref[...], 0.0)                                        # (Np, Dp) f32
    # Fold the branch weight in here; keep g on-chip in bf16 for the 2nd matmul.
    g_ref[...] = jnp.dot(h.astype(jnp.bfloat16), w2_ref[0],
                         preferred_element_type=jnp.float32).astype(g_ref.dtype)
    out_ref[0] = (jnp.dot(adj, g_ref[...], preferred_element_type=jnp.float32)
                  + b2_ref[0]).astype(out_ref.dtype)


def _gcn_layer1_kernel(adj_ref, w1_ref, b1_ref, w2_ref, g_ref):
    # g_rows = relu(adj_rows @ W1 + b1) @ W2      (W2 folded into pass 1)
    adj = adj_ref[0]                                               # (tm, Np) bf16
    h = jnp.maximum(
        jnp.dot(adj, w1_ref[...], preferred_element_type=jnp.float32)
        + b1_ref[...], 0.0)
    g_ref[0] = jnp.dot(h.astype(jnp.bfloat16), w2_ref[0],
                       preferred_element_type=jnp.float32).astype(g_ref.dtype)


def _gcn_layer2_kernel(adj_ref, g_ref, b2_ref, out_ref):
    # out_rows = adj_rows @ g + b2      (single matmul per tile)
    adj = adj_ref[0]                                               # (tm, Np) bf16
    out_ref[0] = (jnp.dot(adj, g_ref[0], preferred_element_type=jnp.float32)
                  + b2_ref[0]).astype(out_ref.dtype)


# ------------------------------ sizing helpers --------------------------------


def _fused_fits_vmem(np_, dp):
    bytes_ = (2 * np_ * np_ * 2      # adj block (double-buffered, bf16)
              + 2 * np_ * dp * 2     # W1 (constant block, counted conservatively)
              + 2 * dp * dp * 2      # W_branch
              + 2 * np_ * dp * 4     # out block (f32)
              + np_ * dp * 2         # g scratch (bf16)
              + 8 * dp * 4)          # biases
    return bytes_ <= _VMEM_BUDGET


def _pick_tm(np_, dp):
    # Largest row tile in {512, 256, 128} dividing Np that fits the VMEM budget.
    for tm in (512, 256, 128):
        if np_ % tm:
            continue
        l1 = 2 * tm * np_ * 2 + 2 * np_ * dp * 2 + 2 * dp * dp * 2 \
            + 2 * tm * dp * 2 + 2 * dp * 4
        l2 = 2 * tm * np_ * 2 + 2 * np_ * dp * 2 + 2 * tm * dp * 4 + 2 * dp * 4
        if max(l1, l2) <= _VMEM_BUDGET:
            return tm
    return 128


# ------------------------------- padded forward -------------------------------


def gcn_padded(adjs_p, w1_p, b1_p, w2_p, b2_p):
    """Two-layer GCN on pre-padded, pre-cast inputs.

    adjs_p : (3, Np, Np) bf16   w1_p: (Np, Dp) bf16   b1_p: (1, Dp) f32
    w2_p   : (3, Dp, Dp) bf16   b2_p: (3, 1, Dp) f32
    returns (3, Np, Dp) f32.
    """
    nb, np_, _ = adjs_p.shape
    dp = w1_p.shape[1]

    if _fused_fits_vmem(np_, dp):
        # ---- fully fused: A read once, g stays on-chip ----
        cost = pl.CostEstimate(
            flops=2 * nb * (2 * np_ * np_ * dp + np_ * dp * dp),
            transcendentals=0,
            bytes_accessed=adjs_p.size * 2 + w1_p.size * 2 + w2_p.size * 2
            + b1_p.size * 4 + b2_p.size * 4 + nb * np_ * dp * 4)
        return pl.pallas_call(
            _gcn_fused_kernel,
            out_shape=jax.ShapeDtypeStruct((nb, np_, dp), jnp.float32),
            grid=(nb,),
            in_specs=[
                pl.BlockSpec((1, np_, np_), lambda b: (b, 0, 0)),   # adj (branch)
                pl.BlockSpec((np_, dp), lambda b: (0, 0)),          # W1 (shared)
                pl.BlockSpec((1, dp), lambda b: (0, 0)),            # b1 (shared)
                pl.BlockSpec((1, dp, dp), lambda b: (b, 0, 0)),     # W2/W3/W4
                pl.BlockSpec((1, 1, dp), lambda b: (b, 0, 0)),      # b2/b3/b4
            ],
            out_specs=pl.BlockSpec((1, np_, dp), lambda b: (b, 0, 0)),
            scratch_shapes=[pltpu.VMEM((np_, dp), jnp.bfloat16)],
            compiler_params=pltpu.CompilerParams(
                dimension_semantics=("parallel",),
                vmem_limit_bytes=_VMEM_LIMIT),
            cost_estimate=cost,
        )(adjs_p, w1_p, b1_p, w2_p, b2_p)

    # ---- fallback: row-tiled two-pass path for very large voc sizes ----
    tm = _pick_tm(np_, dp)
    n_row_tiles = np_ // tm
    cparams = pltpu.CompilerParams(
        dimension_semantics=("parallel", "parallel"),
        vmem_limit_bytes=_VMEM_LIMIT)

    g = pl.pallas_call(
        _gcn_layer1_kernel,
        out_shape=jax.ShapeDtypeStruct((nb, np_, dp), jnp.bfloat16),
        grid=(nb, n_row_tiles),
        in_specs=[
            pl.BlockSpec((1, tm, np_), lambda b, i: (b, i, 0)),     # adj row tile
            pl.BlockSpec((np_, dp), lambda b, i: (0, 0)),           # W1 (shared)
            pl.BlockSpec((1, dp), lambda b, i: (0, 0)),             # b1 (shared)
            pl.BlockSpec((1, dp, dp), lambda b, i: (b, 0, 0)),      # W2/W3/W4
        ],
        out_specs=pl.BlockSpec((1, tm, dp), lambda b, i: (b, i, 0)),
        compiler_params=cparams,
    )(adjs_p, w1_p, b1_p, w2_p)

    return pl.pallas_call(
        _gcn_layer2_kernel,
        out_shape=jax.ShapeDtypeStruct((nb, np_, dp), jnp.float32),
        grid=(nb, n_row_tiles),
        in_specs=[
            pl.BlockSpec((1, tm, np_), lambda b, i: (b, i, 0)),     # adj row tile
            pl.BlockSpec((1, np_, dp), lambda b, i: (b, 0, 0)),     # g (per branch)
            pl.BlockSpec((1, 1, dp), lambda b, i: (b, 0, 0)),       # b2/b3/b4
        ],
        out_specs=pl.BlockSpec((1, tm, dp), lambda b, i: (b, i, 0)),
        compiler_params=cparams,
    )(adjs_p, g, b2_p)


@functools.partial(jax.jit, static_argnames=("n", "d"))
def gcn_forward(adjs_p, w1_p, b1_p, w2_p, b2_p, *, n, d):
    """Reproduces GCN.forward(): returns (ehr_emb, ddi_emb, med131_emb)."""
    out = gcn_padded(adjs_p, w1_p, b1_p, w2_p, b2_p)
    return out[0, :n, :d], out[1, :n, :d], out[2, :n, :d]


# ----------------------------- one-time preprocessing ------------------------


def normalize(mx):
    """Row-normalize a dense matrix (matches GCN.normalize)."""
    rowsum = jnp.sum(mx, axis=1)
    r_inv = jnp.where(rowsum == 0.0, 0.0, 1.0 / rowsum)
    return mx * r_inv[:, None]


def init_graphconv_params(key, in_features, out_features):
    """Matches GraphConvolution.reset_parameters: U(-stdv, stdv), stdv=1/sqrt(out)."""
    stdv = 1.0 / (out_features ** 0.5)
    kw, kb = jax.random.split(key)
    w = jax.random.uniform(kw, (in_features, out_features), jnp.float32, -stdv, stdv)
    b = jax.random.uniform(kb, (1, out_features), jnp.float32, -stdv, stdv)
    return w, b


def prepare_inputs(voc_size, emb_dim, ehr_adj, ddi_adj, medicine131, params):
    """One-time normalize(adj + I) + pad + bf16 cast (graphs/weights static).

    Hoisted out of the forward so each call pays no pad/convert HBM pass.
    Zero padding is numerically exact (padded adj rows/cols and weight
    rows/cols are 0; padded g rows are killed by the zero adj columns).
    """
    n, d = voc_size, emb_dim
    np_ = _round_up(max(n, 8), 128)      # lane-dense contraction / row dim
    dp = _round_up(max(d, 8), 128)       # lane-dense output dim

    eye = jnp.eye(n, dtype=jnp.float32)
    adjs = jnp.stack([normalize(a.astype(jnp.float32) + eye)
                      for a in (ehr_adj, ddi_adj, medicine131)])
    adjs_p = jnp.pad(adjs, ((0, 0), (0, np_ - n), (0, np_ - n))).astype(jnp.bfloat16)

    (w1, b1), (w2, b2), (w3, b3), (w4, b4) = params
    w1_p = jnp.pad(w1, ((0, np_ - n), (0, dp - d))).astype(jnp.bfloat16)
    b1_p = jnp.pad(b1, ((0, 0), (0, dp - d))).astype(jnp.float32)
    w2_p = jnp.pad(jnp.stack([w2, w3, w4]),
                   ((0, 0), (0, dp - d), (0, dp - d))).astype(jnp.bfloat16)
    b2_p = jnp.pad(jnp.stack([b2, b3, b4]),
                   ((0, 0), (0, 0), (0, dp - d))).astype(jnp.float32)
    return adjs_p, w1_p, b1_p, w2_p, b2_p


# ------------------------------------ main ------------------------------------


if __name__ == "__main__":
    voc_size = 16   # small voc_size
    emb_dim = 32

    key = jax.random.PRNGKey(0)
    k_adj1, k_adj2, k_adj3, k_p1, k_p2, k_p3, k_p4 = jax.random.split(key, 7)

    # Synthetic symmetric binary adjacency matrices.
    def rand_adj(k):
        a = jax.random.bernoulli(k, 0.2, (voc_size, voc_size)).astype(jnp.float32)
        return jnp.maximum(a, a.T)

    ehr_adj = rand_adj(k_adj1)
    ddi_adj = rand_adj(k_adj2)
    medicine131 = rand_adj(k_adj3)

    # Deterministic parameter init (gcn1: voc->emb, gcn2/3/4: emb->emb).
    params = (
        init_graphconv_params(k_p1, voc_size, emb_dim),
        init_graphconv_params(k_p2, emb_dim, emb_dim),
        init_graphconv_params(k_p3, emb_dim, emb_dim),
        init_graphconv_params(k_p4, emb_dim, emb_dim),
    )

    prepared = prepare_inputs(voc_size, emb_dim, ehr_adj, ddi_adj, medicine131,
                              params)
    prepared = jax.block_until_ready(prepared)

    ehr_emb, ddi_emb, med_emb = gcn_forward(*prepared, n=voc_size, d=emb_dim)
    jax.block_until_ready((ehr_emb, ddi_emb, med_emb))

    # Plain-JAX f32 reference (dropout == identity in eval mode, x == I).
    eye = jnp.eye(voc_size, dtype=jnp.float32)
    adjs_ref = jnp.stack([normalize(a + eye)
                          for a in (ehr_adj, ddi_adj, medicine131)])

    def ref_branch(adj, w1, b1, w2, b2):
        h = jnp.maximum(adj @ w1 + b1, 0.0)
        return adj @ (h @ w2) + b2

    (w1, b1), (w2, b2), (w3, b3), (w4, b4) = params
    refs = (ref_branch(adjs_ref[0], w1, b1, w2, b2),
            ref_branch(adjs_ref[1], w1, b1, w3, b3),
            ref_branch(adjs_ref[2], w1, b1, w4, b4))

    for got, want in zip((ehr_emb, ddi_emb, med_emb), refs):
        assert got.shape == (voc_size, emb_dim)
        err = float(jnp.max(jnp.abs(got - want)))
        assert jnp.allclose(got, want, atol=5e-2, rtol=5e-2), err

    print("KERNEL_OK")
</pallas_src>

<mosaic_0001>
module attributes {stable_mosaic.version = 11 : i64} {
  func.func @_gcn_fused_kernel(%arg0: i32, %arg1: memref<1x128x128xbf16, #tpu.memory_space<vmem>>, %arg2: memref<128x128xbf16, #tpu.memory_space<vmem>>, %arg3: memref<1x128xf32, #tpu.memory_space<vmem>>, %arg4: memref<1x128x128xbf16, #tpu.memory_space<vmem>>, %arg5: memref<1x1x128xf32, #tpu.memory_space<vmem>>, %arg6: memref<1x128x128xf32, #tpu.memory_space<vmem>>, %arg7: memref<128x128xbf16, #tpu.memory_space<vmem>>) attributes {dimension_semantics = [#tpu.dimension_semantics<parallel>], iteration_bounds = array<i64: 3>, scalar_prefetch = 0 : i64, scratch_operands = 1 : i64, tpu.core_type = #tpu.core_type<tc>, window_params = [{transform_indices = @transform_0, window_bounds = array<i64: 1, 128, 128>}, {pipeline_mode = #tpu.pipeline_mode<synchronous>, transform_indices = @transform_1, window_bounds = array<i64: 128, 128>}, {pipeline_mode = #tpu.pipeline_mode<synchronous>, transform_indices = @transform_2, window_bounds = array<i64: 1, 128>}, {transform_indices = @transform_3, window_bounds = array<i64: 1, 128, 128>}, {transform_indices = @transform_4, window_bounds = array<i64: 1, 1, 128>}, {transform_indices = @transform_5, window_bounds = array<i64: 1, 128, 128>}]} {
    %c0 = arith.constant 0 : index
    %c0_0 = arith.constant 0 : index
    %c0_1 = arith.constant 0 : index
    %0 = vector.load %arg1[%c0, %c0_0, %c0_1] : memref<1x128x128xbf16, #tpu.memory_space<vmem>>, vector<1x128x128xbf16>
    %1 = vector.shape_cast %0 : vector<1x128x128xbf16> to vector<128x128xbf16>
    %c0_2 = arith.constant 0 : index
    %c0_3 = arith.constant 0 : index
    %2 = vector.load %arg2[%c0_2, %c0_3] : memref<128x128xbf16, #tpu.memory_space<vmem>>, vector<128x128xbf16>
    %cst = arith.constant dense<0.000000e+00> : vector<128x128xf32>
    %3 = tpu.matmul %1, %2, %cst {dimension_numbers = #tpu.dot_dimension_numbers<[1], [0], [0], [1], [0, 0, 1, 1], [], []>} : vector<128x128xbf16>, vector<128x128xbf16>, vector<128x128xf32> -> vector<128x128xf32>
    %c0_4 = arith.constant 0 : index
    %c0_5 = arith.constant 0 : index
    %4 = vector.load %arg3[%c0_4, %c0_5] : memref<1x128xf32, #tpu.memory_space<vmem>>, vector<1x128xf32>
    %5 = vector.broadcast %4 : vector<1x128xf32> to vector<128x128xf32>
    %6 = arith.addf %3, %5 : vector<128x128xf32>
    %cst_6 = arith.constant 0.000000e+00 : f32
    %7 = vector.broadcast %cst_6 : f32 to vector<128x128xf32>
    %8 = arith.maximumf %6, %7 : vector<128x128xf32>
    %9 = arith.truncf %8 : vector<128x128xf32> to vector<128x128xbf16>
    %c0_7 = arith.constant 0 : index
    %c0_8 = arith.constant 0 : index
    %c0_9 = arith.constant 0 : index
    %10 = vector.load %arg4[%c0_7, %c0_8, %c0_9] : memref<1x128x128xbf16, #tpu.memory_space<vmem>>, vector<1x128x128xbf16>
    %11 = vector.shape_cast %10 : vector<1x128x128xbf16> to vector<128x128xbf16>
    %cst_10 = arith.constant dense<0.000000e+00> : vector<128x128xf32>
    %12 = tpu.matmul %9, %11, %cst_10 {dimension_numbers = #tpu.dot_dimension_numbers<[1], [0], [0], [1], [0, 0, 1, 1], [], []>} : vector<128x128xbf16>, vector<128x128xbf16>, vector<128x128xf32> -> vector<128x128xf32>
    %13 = arith.truncf %12 : vector<128x128xf32> to vector<128x128xbf16>
    %c0_11 = arith.constant 0 : index
    %c0_12 = arith.constant 0 : index
    %14 = vector.load %arg7[%c0_11, %c0_12] : memref<128x128xbf16, #tpu.memory_space<vmem>>, vector<128x128xbf16>
    tpu.vector_store %arg7[%c0_11, %c0_12], %13 {strides = array<i32>} : memref<128x128xbf16, #tpu.memory_space<vmem>>, vector<128x128xbf16>,
    %c0_13 = arith.constant 0 : index
    %c0_14 = arith.constant 0 : index
    %15 = vector.load %arg7[%c0_13, %c0_14] : memref<128x128xbf16, #tpu.memory_space<vmem>>, vector<128x128xbf16>
    %cst_15 = arith.constant dense<0.000000e+00> : vector<128x128xf32>
    %16 = tpu.matmul %1, %15, %cst_15 {dimension_numbers = #tpu.dot_dimension_numbers<[1], [0], [0], [1], [0, 0, 1, 1], [], []>} : vector<128x128xbf16>, vector<128x128xbf16>, vector<128x128xf32> -> vector<128x128xf32>
    %c0_16 = arith.constant 0 : index
    %c0_17 = arith.constant 0 : index
    %c0_18 = arith.constant 0 : index
    %17 = vector.load %arg5[%c0_16, %c0_17, %c0_18] : memref<1x1x128xf32, #tpu.memory_space<vmem>>, vector<1x1x128xf32>
    %18 = vector.shape_cast %17 : vector<1x1x128xf32> to vector<1x128xf32>
    %19 = vector.broadcast %18 : vector<1x128xf32> to vector<128x128xf32>
    %20 = arith.addf %16, %19 : vector<128x128xf32>
    %c0_19 = arith.constant 0 : index
    %c0_20 = arith.constant 0 : index
    %c0_21 = arith.constant 0 : index
    %21 = vector.load %arg6[%c0_19, %c0_20, %c0_21] : memref<1x128x128xf32, #tpu.memory_space<vmem>>, vector<1x128x128xf32>
    %22 = vector.shape_cast %21 : vector<1x128x128xf32> to vector<128x128xf32>
    %23 = vector.shape_cast %20 : vector<128x128xf32> to vector<1x128x128xf32>
    tpu.vector_store %arg6[%c0_19, %c0_20, %c0_21], %23 {strides = array<i32>} : memref<1x128x128xf32, #tpu.memory_space<vmem>>, vector<1x128x128xf32>,
    return
  }
  func.func @transform_0(%arg0: i32) -> (i32, i32, i32) {
    %c0_i32 = arith.constant 0 : i32
    %c0_i32_0 = arith.constant 0 : i32
    %c0_i32_1 = arith.constant 0 : i32
    return %arg0, %c0_i32, %c0_i32_0 : i32, i32, i32
  }
  func.func @transform_1(%arg0: i32) -> (i32, i32) {
    %c0_i32 = arith.constant 0 : i32
    %c0_i32_0 = arith.constant 0 : i32
    %c0_i32_1 = arith.constant 0 : i32
    return %c0_i32, %c0_i32_0 : i32, i32
  }
  func.func @transform_2(%arg0: i32) -> (i32, i32) {
    %c0_i32 = arith.constant 0 : i32
    %c0_i32_0 = arith.constant 0 : i32
    %c0_i32_1 = arith.constant 0 : i32
    return %c0_i32, %c0_i32_0 : i32, i32
  }
  func.func @transform_3(%arg0: i32) -> (i32, i32, i32) {
    %c0_i32 = arith.constant 0 : i32
    %c0_i32_0 = arith.constant 0 : i32
    %c0_i32_1 = arith.constant 0 : i32
    return %arg0, %c0_i32, %c0_i32_0 : i32, i32, i32
  }
  func.func @transform_4(%arg0: i32) -> (i32, i32, i32) {
    %c0_i32 = arith.constant 0 : i32
    %c0_i32_0 = arith.constant 0 : i32
    %c0_i32_1 = arith.constant 0 : i32
    return %arg0, %c0_i32, %c0_i32_0 : i32, i32, i32
  }
  func.func @transform_5(%arg0: i32) -> (i32, i32, i32) {
    %c0_i32 = arith.constant 0 : i32
    %c0_i32_0 = arith.constant 0 : i32
    %c0_i32_1 = arith.constant 0 : i32
    return %arg0, %c0_i32, %c0_i32_0 : i32, i32, i32
  }
}

</mosaic_0001>

<llo_original>
// kernel: gcn_forward.1
$region0: #{gcn_forward.1}
  #allocation0 [shape = 'u32[]', space=smem, size = 0x4, offset = 0x4, fixed_abs, tag = 'smem constant byte address 0x4 - core index']
  #allocation1 [shape = 'u32[144,128]{1,0:T(1,128)}', space=vmem, size = 0x12000, scoped, tag = 'internal scratch']
  #allocation2 [shape = 'bf16[128,128]{1,0:T(8,128)(2,1)}', space=vmem, size = 0x8000, scoped, tag = 'scratch operand']
  %s0 = inlined_call_operand.hbm [shape: bf16[3,128,128], index: 0, kind: input, shape index: {}]
  %s1 = inlined_call_operand.hbm [shape: bf16[128,128], index: 1, kind: input, shape index: {}]
  %s2 = inlined_call_operand.vmem [shape: f32[1,128], index: 2, kind: input, shape index: {}]
  %s3 = inlined_call_operand.hbm [shape: bf16[3,128,128], index: 3, kind: input, shape index: {}]
  %s4 = inlined_call_operand.vmem [shape: f32[3,1,128], index: 4, kind: input, shape index: {}]
  %s5 = inlined_call_operand.vmem [shape: f32[3,128,128], index: 5, kind: output, shape index: {}]
  %s6 = sld [smem:[#allocation0]]
  $region65: #{gcn_forward.1} parent=0
    _
  %s8 = ssub.s32 1, %s6
  %s9 = scalar_select 0, %s8, %s6
  $region1: #{gcn_forward.1} parent=0
    #allocation3 [shape = 'u8[65536]{0}', space=vmem, size = 0x10000, scoped, tag = 'input window, operand 0']
    #allocation4 [shape = 's32[2]{0}', space=sflag, size = 0x8, scoped, tag = 'scoped memory for gcn_forward.1']
    #allocation5 [shape = 'u8[32768]{0}', space=vmem, size = 0x8000, scoped, tag = 'input window, operand 1, single buffered']
    #allocation6 [shape = 's32[1]{0}', space=sflag, size = 0x4, scoped, tag = 'scoped memory for gcn_forward.1']
    #allocation7 [shape = 'u8[65536]{0}', space=vmem, size = 0x10000, scoped, tag = 'input window, operand 3']
    %10 = vsyncpa [#allocation4], 0
    %s11 = scalar_lea.sflag [#allocation4], 1
    %12 = vsyncpa %s11, 0
    %13 = vsyncpa [#allocation6], 0
    loop: start=0, step=1, limit=5
    $region2: #{gcn_forward.1} parent=1 // loop_pre_header
      _
    $region3: #{gcn_forward.1} parent=1 // loop_header
      %s15 = sphi 0, %s19
      %p16 = scmp.ge.s32.totalorder %s15, 5
      %s25 = sphi 0, %s27
      %s28 = sphi 0, %s25
      %s29 = sphi 0, %s28
      %s45 = sphi 0, %s29
      %s49 = sphi 0, %s49
      %s51 = sphi 0, %s49
      %s52 = sphi 0, %s51
      %s66 = sphi 0, %s52
      %s70 = sphi 0, %s70
      %s72 = sphi 0, %s70
      %s73 = sphi 0, %s72
      %s87 = sphi 0, %s73
      %s93 = sphi 0, %s95
      %s96 = sphi 0, %s93
      %s97 = sphi 0, %s96
      %s113 = sphi 0, %s97
      %s119 = sphi 0, %s121
      %s122 = sphi 0, %s119
      %s123 = sphi 0, %s122
      %s139 = sphi 0, %s123
      %s145 = sphi 0, %s147
      %s148 = sphi 0, %s145
      %s149 = sphi 0, %s148
      %s165 = sphi 0, %s149
    $region4: #{gcn_forward.1} parent=1 // loop_header_branch
      %18 = sbr.rel (%p16) target = $region8
    $region5: #{gcn_forward.1} parent=1 // loop_body
      %s20 = ssub.s32 %s15, 1
      %s21 = ssub.s32 %s15, 2
      %s22 = sadd.s32 %s15, 1
      %s23 = ssub.s32 %s15, %s22
      %p24 = scmp.eq.s32.totalorder %s23, 0
      %s26 = sadd.s32 %s25, 1
      %s27 = scalar_select %p24, %s25, %s26
      %p30 = pneg %p24
      %p31 = scmp.eq.s32.totalorder %s15, 2
      %p32 = por %p30, %p31
      %p33 = scmp.ne.s32.totalorder %s25, %s28
      %p34 = scmp.eq.s32.totalorder %s15, 0
      %p35 = por %p33, %p34
      %p36 = scmp.ne.s32.totalorder %s25, %s28
      %p37 = scmp.eq.s32.totalorder %s20, 2
      %p38 = por %p36, %p37
      %p39 = scmp.ne.s32.totalorder %s28, %s29
      %p40 = scmp.eq.s32.totalorder %s20, 0
      %p41 = por %p39, %p40
      %p42 = scmp.ne.s32.totalorder %s28, %s29
      %p43 = scmp.eq.s32.totalorder %s21, 2
      %p44 = por %p42, %p43
      %p46 = scmp.ne.s32.totalorder %s29, %s45
      %p47 = scmp.eq.s32.totalorder %s21, 0
      %p48 = por %p46, %p47
      %s50 = sadd.s32 %s49, 1
      %p53 = scmp.eq.s32.totalorder %s15, 2
      %p54 = scmp.ne.s32.totalorder %s49, %s51
      %p55 = scmp.eq.s32.totalorder %s15, 0
      %p56 = por %p54, %p55
      %p57 = scmp.ne.s32.totalorder %s49, %s51
      %p58 = scmp.eq.s32.totalorder %s20, 2
      %p59 = por %p57, %p58
      %p60 = scmp.ne.s32.totalorder %s51, %s52
      %p61 = scmp.eq.s32.totalorder %s20, 0
      %p62 = por %p60, %p61
      %p63 = scmp.ne.s32.totalorder %s51, %s52
      %p64 = scmp.eq.s32.totalorder %s21, 2
      %p65 = por %p63, %p64
      %p67 = scmp.ne.s32.totalorder %s52, %s66
      %p68 = scmp.eq.s32.totalorder %s21, 0
      %p69 = por %p67, %p68
      %s71 = sadd.s32 %s70, 1
      %p74 = scmp.eq.s32.totalorder %s15, 2
      %p75 = scmp.ne.s32.totalorder %s70, %s72
      %p76 = scmp.eq.s32.totalorder %s15, 0
      %p77 = por %p75, %p76
      %p78 = scmp.ne.s32.totalorder %s70, %s72
      %p79 = scmp.eq.s32.totalorder %s20, 2
      %p80 = por %p78, %p79
      %p81 = scmp.ne.s32.totalorder %s72, %s73
      %p82 = scmp.eq.s32.totalorder %s20, 0
      %p83 = por %p81, %p82
      %p84 = scmp.ne.s32.totalorder %s72, %s73
      %p85 = scmp.eq.s32.totalorder %s21, 2
      %p86 = por %p84, %p85
      %p88 = scmp.ne.s32.totalorder %s73, %s87
      %p89 = scmp.eq.s32.totalorder %s21, 0
      %p90 = por %p88, %p89
      %s91 = ssub.s32 %s15, %s22
      %p92 = scmp.eq.s32.totalorder %s91, 0
      %s94 = sadd.s32 %s93, 1
      %s95 = scalar_select %p92, %s93, %s94
      %p98 = pneg %p92
      %p99 = scmp.eq.s32.totalorder %s15, 2
      %p100 = por %p98, %p99
      %p101 = scmp.ne.s32.totalorder %s93, %s96
      %p102 = scmp.eq.s32.totalorder %s15, 0
      %p103 = por %p101, %p102
      %p104 = scmp.ne.s32.totalorder %s93, %s96
      %p105 = scmp.eq.s32.totalorder %s20, 2
      %p106 = por %p104, %p105
      %p107 = scmp.ne.s32.totalorder %s96, %s97
      %p108 = scmp.eq.s32.totalorder %s20, 0
      %p109 = por %p107, %p108
      %p110 = scmp.ne.s32.totalorder %s96, %s97
      %p111 = scmp.eq.s32.totalorder %s21, 2
      %p112 = por %p110, %p111
      %p114 = scmp.ne.s32.totalorder %s97, %s113
      %p115 = scmp.eq.s32.totalorder %s21, 0
      %p116 = por %p114, %p115
      %s117 = ssub.s32 %s15, %s22
      %p118 = scmp.eq.s32.totalorder %s117, 0
      %s120 = sadd.s32 %s119, 1
      %s121 = scalar_select %p118, %s119, %s120
      %p124 = pneg %p118
      %p125 = scmp.eq.s32.totalorder %s15, 2
      %p126 = por %p124, %p125
      %p127 = scmp.ne.s32.totalorder %s119, %s122
      %p128 = scmp.eq.s32.totalorder %s15, 0
      %p129 = por %p127, %p128
      %p130 = scmp.ne.s32.totalorder %s119, %s122
      %p131 = scmp.eq.s32.totalorder %s20, 2
      %p132 = por %p130, %p131
      %p133 = scmp.ne.s32.totalorder %s122, %s123
      %p134 = scmp.eq.s32.totalorder %s20, 0
      %p135 = por %p133, %p134
      %p136 = scmp.ne.s32.totalorder %s122, %s123
      %p137 = scmp.eq.s32.totalorder %s21, 2
      %p138 = por %p136, %p137
      %p140 = scmp.ne.s32.totalorder %s123, %s139
      %p141 = scmp.eq.s32.totalorder %s21, 0
      %p142 = por %p140, %p141
      %s143 = ssub.s32 %s15, %s22
      %p144 = scmp.eq.s32.totalorder %s143, 0
      %s146 = sadd.s32 %s145, 1
      %s147 = scalar_select %p144, %s145, %s146
      %p150 = pneg %p144
      %p151 = scmp.eq.s32.totalorder %s15, 2
      %p152 = por %p150, %p151
      %p153 = scmp.ne.s32.totalorder %s145, %s148
      %p154 = scmp.eq.s32.totalorder %s15, 0
      %p155 = por %p153, %p154
      %p156 = scmp.ne.s32.totalorder %s145, %s148
      %p157 = scmp.eq.s32.totalorder %s20, 2
      %p158 = por %p156, %p157
      %p159 = scmp.ne.s32.totalorder %s148, %s149
      %p160 = scmp.eq.s32.totalorder %s20, 0
      %p161 = por %p159, %p160
      %p162 = scmp.ne.s32.totalorder %s148, %s149
      %p163 = scmp.eq.s32.totalorder %s21, 2
      %p164 = por %p162, %p163
      %p166 = scmp.ne.s32.totalorder %s149, %s165
      %p167 = scmp.eq.s32.totalorder %s21, 0
      %p168 = por %p166, %p167
      %p169 = scmp.le.s32.totalorder 1, %s15
      %p170 = scmp.lt.s32.totalorder %s15, 4
      %p171 = pnand %p169, %p170
      %p172 = pneg %p171
      // Predicated region
      $region9: #{gcn_forward.1} parent=5 // pred_check
        _
      $region10: #{gcn_forward.1} parent=5 // pred_check_branch
        %174 = sbr.rel (%p171) target = $region12
      $region11: #{gcn_forward.1} parent=5 // pred_region
        %s175 = ssub.s32 %s15, 1
        // Predicated region
        $region13: #{gcn_forward.1} parent=11 // pred_check
          %p176 = pneg %p62
        $region14: #{gcn_forward.1} parent=11 // pred_check_branch
          %178 = sbr.rel (%p176) target = $region16
        $region15: #{gcn_forward.1} parent=11 // pred_region
          %s180 = ssub.s32 1024, 1024
          %181 = vsyncadd [#allocation6], %s180
          %s182 = sshll.u32 [#allocation5], 4
          %s183 = int_to_ptr.vmem [resolvable:$true] %s182
          %188 = dma.hbm_to_vmem [thread:$0]  %s1, 1024, %s183, [#allocation6], 64, 64, 4
        $region16: #{gcn_forward.1} parent=11 // pred_fallthru
          _
        // Predicated region
        $region17: #{gcn_forward.1} parent=11 // pred_check
          %p189 = pneg %p83
        $region18: #{gcn_forward.1} parent=11 // pred_check_branch
          %191 = sbr.rel (%p189) target = $region20
        $region19: #{gcn_forward.1} parent=11 // pred_region
          _
        $region20: #{gcn_forward.1} parent=11 // pred_fallthru
          _
      $region12: #{gcn_forward.1} parent=5 // pred_fallthru
        _
      %p192 = scmp.lt.s32.totalorder %s15, 3
      // Predicated region
      $region21: #{gcn_forward.1} parent=5 // pred_check
        %p193 = pneg %p192
      $region22: #{gcn_forward.1} parent=5 // pred_check_branch
        %195 = sbr.rel (%p193) target = $region24
      $region23: #{gcn_forward.1} parent=5 // pred_region
        // Predicated region
        $region25: #{gcn_forward.1} parent=23 // pred_check
          %p196 = pneg %p35
        $region26: #{gcn_forward.1} parent=23 // pred_check_branch
          %198 = sbr.rel (%p196) target = $region28
        $region27: #{gcn_forward.1} parent=23 // pred_region
          %s199 = sand.u32 %s15, 1
          %s200 = scalar_lea.sflag [#allocation4], %s199
          %s201 = sand.u32 %s25, 1
          %s202 = smul.addr %s201, 64
          %s203 = scalar_lea.vmem [#allocation3], %s202
          %s205 = ssub.s32 1024, 1024
          %206 = vsyncadd %s200, %s205
          %s207 = smul.addr %s15, 16
          %s208 = smul.addr %s207, 64
          %s209 = scalar_lea.hbm %s0, %s208
          %s210 = sshll.u32 %s203, 4
          %s211 = int_to_ptr.vmem [resolvable:$true] %s210
          %216 = dma.hbm_to_vmem [thread:$0]  %s209, 1024, %s211, %s200, 64, 64, 4
        $region28: #{gcn_forward.1} parent=23 // pred_fallthru
          _
        // Predicated region
        $region29: #{gcn_forward.1} parent=23 // pred_check
          %p217 = pneg %p103
        $region30: #{gcn_forward.1} parent=23 // pred_check_branch
          %219 = sbr.rel (%p217) target = $region32
        $region31: #{gcn_forward.1} parent=23 // pred_region
          %s220 = sand.u32 %s15, 1
          %s221 = scalar_lea.sflag [#allocation4], %s220
          %s222 = sand.u32 %s93, 1
          %s223 = smul.addr %s222, 64
          %s224 = scalar_lea.vmem [#allocation7], %s223
          %s226 = ssub.s32 1024, 1024
          %227 = vsyncadd %s221, %s226
          %s228 = smul.addr %s15, 16
          %s229 = smul.addr %s228, 64
          %s230 = scalar_lea.hbm %s3, %s229
          %s231 = sshll.u32 %s224, 4
          %s232 = int_to_ptr.vmem [resolvable:$true] %s231
          %237 = dma.hbm_to_vmem [thread:$0]  %s230, 1024, %s232, %s221, 64, 64, 4
        $region32: #{gcn_forward.1} parent=23 // pred_fallthru
          _
        // Predicated region
        $region33: #{gcn_forward.1} parent=23 // pred_check
          %p238 = pneg %p129
        $region34: #{gcn_forward.1} parent=23 // pred_check_branch
          %240 = sbr.rel (%p238) target = $region36
        $region35: #{gcn_forward.1} parent=23 // pred_region
          %p241 = scmp.lt.s32.totalorder %s15, 2
          %s242 = scalar_select %p241, %s15, 2
          %s243 = scalar_lea.vmem %s4, %s242
        $region36: #{gcn_forward.1} parent=23 // pred_fallthru
          _
      $region24: #{gcn_forward.1} parent=5 // pred_fallthru
        _
      %p244 = scmp.le.s32.totalorder 1, %s15
      %p245 = scmp.lt.s32.totalorder %s15, 4
      %p246 = pnand %p244, %p245
      %p247 = pneg %p246
      // Predicated region
      $region37: #{gcn_forward.1} parent=5 // pred_check
        _
      $region38: #{gcn_forward.1} parent=5 // pred_check_branch
        %249 = sbr.rel (%p246) target = $region40
      $region39: #{gcn_forward.1} parent=5 // pred_region
        %s250 = ssub.s32 %s15, 1
        %s251 = sand.u32 %s20, 1
        %s252 = scalar_lea.sflag [#allocation4], %s251
        %s253 = sand.u32 %s28, 1
        %s254 = smul.addr %s253, 64
        %s255 = scalar_lea.vmem [#allocation3], %s254
        // Predicated region
        $region41: #{gcn_forward.1} parent=39 // pred_check
          %p256 = pneg %p41
        $region42: #{gcn_forward.1} parent=39 // pred_check_branch
          %258 = sbr.rel (%p256) target = $region44
        $region43: #{gcn_forward.1} parent=39 // pred_region
          %259 = dma.done %s252, 1024
        $region44: #{gcn_forward.1} parent=39 // pred_fallthru
          _
        // Predicated region
        $region45: #{gcn_forward.1} parent=39 // pred_check
          %p260 = pneg %p62
        $region46: #{gcn_forward.1} parent=39 // pred_check_branch
          %262 = sbr.rel (%p260) target = $region48
        $region47: #{gcn_forward.1} parent=39 // pred_region
          %263 = dma.done [#allocation6], 1024
        $region48: #{gcn_forward.1} parent=39 // pred_fallthru
          _
        %s264 = sand.u32 %s20, 1
        %s265 = scalar_lea.sflag [#allocation4], %s264
        %s266 = sand.u32 %s96, 1
        %s267 = smul.addr %s266, 64
        %s268 = scalar_lea.vmem [#allocation7], %s267
        // Predicated region
        $region49: #{gcn_forward.1} parent=39 // pred_check
          %p269 = pneg %p109
        $region50: #{gcn_forward.1} parent=39 // pred_check_branch
          %271 = sbr.rel (%p269) target = $region52
        $region51: #{gcn_forward.1} parent=39 // pred_region
          %272 = dma.done %s265, 1024
        $region52: #{gcn_forward.1} parent=39 // pred_fallthru
          _
        %s273 = sand.u32 %s20, 1
        %s274 = scalar_lea.sflag [#allocation4], %s273
        %s275 = sand.u32 %s28, 1
        %s276 = smul.addr %s275, 64
        %s277 = scalar_lea.vmem [#allocation3], %s276
        %p278 = pneg %p41
        %p279 = pneg %p38
        %p280 = pneg %p62
        %p281 = pneg %p59
        %p282 = pneg %p83
        %p283 = pneg %p80
        %s284 = sand.u32 %s20, 1
        %s285 = scalar_lea.sflag [#allocation4], %s284
        %s286 = sand.u32 %s96, 1
        %s287 = smul.addr %s286, 64
        %s288 = scalar_lea.vmem [#allocation7], %s287
        %p289 = pneg %p109
        %p290 = pneg %p106
        %p291 = scmp.lt.s32.totalorder %s20, 2
        %s292 = scalar_select %p291, %s20, 2
        %s293 = scalar_lea.vmem %s4, %s292
        %p294 = pneg %p135
        %p295 = pneg %p132
        %p296 = pneg %p161
        %p297 = pneg %p158
        %p298 = scmp.lt.s32.totalorder %s20, 2
        %s299 = scalar_select %p298, %s20, 2
        %s300 = smul.addr %s299, 16
        %s301 = smul.addr %s300, 8
        %s302 = scalar_lea.vmem %s5, %s301
        %p303 = scmp.lt.s32.totalorder %s20, 2
        %s304 = scalar_select %p303, %s20, 2
        %s305 = scalar_lea.vmem %s4, %s304
        %p306 = scmp.lt.s32.totalorder %s20, 2
        %s307 = scalar_select %p306, %s20, 2
        %s308 = smul.addr %s307, 16
        %s309 = smul.addr %s308, 8
        %s310 = scalar_lea.vmem %s5, %s309
        %v312 = vld [vmem:[%s255] sm:$0xf]
        %v313 = vld [vmem:[%s255 + $0x4] sm:$0xf]
        %v314 = vld [vmem:[%s255 + $0x8] sm:$0xf]
        %v315 = vld [vmem:[%s255 + $0xc] sm:$0xf]
        %v316 = vld [vmem:[%s255 + $0x10] sm:$0xf]
        %v317 = vld [vmem:[%s255 + $0x14] sm:$0xf]
        %v318 = vld [vmem:[%s255 + $0x18] sm:$0xf]
        %v319 = vld [vmem:[%s255 + $0x1c] sm:$0xf]
        %v320 = vld [vmem:[%s255 + $0x20] sm:$0xf]
        %v321 = vld [vmem:[%s255 + $0x24] sm:$0xf]
        %v322 = vld [vmem:[%s255 + $0x28] sm:$0xf]
        %v323 = vld [vmem:[%s255 + $0x2c] sm:$0xf]
        %v324 = vld [vmem:[%s255 + $0x30] sm:$0xf]
        %v325 = vld [vmem:[%s255 + $0x34] sm:$0xf]
        %v326 = vld [vmem:[%s255 + $0x38] sm:$0xf]
        %v327 = vld [vmem:[%s255 + $0x3c] sm:$0xf]
        %v328 = vld [vmem:[#allocation5] sm:$0xf]
        %v329 = vld [vmem:[#allocation5 + $0x4] sm:$0xf]
        %v330 = vld [vmem:[#allocation5 + $0x8] sm:$0xf]
        %v331 = vld [vmem:[#allocation5 + $0xc] sm:$0xf]
        %v332 = vld [vmem:[#allocation5 + $0x10] sm:$0xf]
        %v333 = vld [vmem:[#allocation5 + $0x14] sm:$0xf]
        %v334 = vld [vmem:[#allocation5 + $0x18] sm:$0xf]
        %v335 = vld [vmem:[#allocation5 + $0x1c] sm:$0xf]
        %v336 = vld [vmem:[#allocation5 + $0x20] sm:$0xf]
        %v337 = vld [vmem:[#allocation5 + $0x24] sm:$0xf]
        %v338 = vld [vmem:[#allocation5 + $0x28] sm:$0xf]
        %v339 = vld [vmem:[#allocation5 + $0x2c] sm:$0xf]
        %v340 = vld [vmem:[#allocation5 + $0x30] sm:$0xf]
        %v341 = vld [vmem:[#allocation5 + $0x34] sm:$0xf]
        %v342 = vld [vmem:[#allocation5 + $0x38] sm:$0xf]
        %v343 = vld [vmem:[#allocation5 + $0x3c] sm:$0xf]
        %v344 = vld [vmem:[%s2] sm:$0x1]
        %v346 = vlaneseq
        %v347 = vshrl.u32 %v346, 7
        %v348 = vsub.s32 0, %v347
        %v349 = vrot.slane %v344, %v348
        %v367 = vunpack.c.l.b16 %v312
        %v368 = vunpack.c.l.b16 %v313
        %v369 = vunpack.c.l.b16 %v314
        %v370 = vunpack.c.l.b16 %v315
        %v371 = vunpack.c.l.b16 %v316
        %v372 = vunpack.c.l.b16 %v317
        %v373 = vunpack.c.l.b16 %v318
        %v374 = vunpack.c.l.b16 %v319
        %v375 = vunpack.c.l.b16 %v320
        %v376 = vunpack.c.l.b16 %v321
        %v377 = vunpack.c.l.b16 %v322
        %v378 = vunpack.c.l.b16 %v323
        %v379 = vunpack.c.l.b16 %v324
        %v380 = vunpack.c.l.b16 %v325
        %v381 = vunpack.c.l.b16 %v326
        %v382 = vunpack.c.l.b16 %v327
        %v383 = vpack.c.b16 %v368, %v367
        %v384 = vpack.c.b16 %v370, %v369
        %v385 = vpack.c.b16 %v372, %v371
        %v386 = vpack.c.b16 %v374, %v373
        %v387 = vpack.c.b16 %v376, %v375
        %v388 = vpack.c.b16 %v378, %v377
        %v389 = vpack.c.b16 %v380, %v379
        %v390 = vpack.c.b16 %v382, %v381
        %v415 = vunpack.c.l.b16 %v328
        %v416 = vunpack.c.l.b16 %v329
        %v417 = vunpack.c.l.b16 %v330
        %v418 = vunpack.c.l.b16 %v331
        %v419 = vunpack.c.l.b16 %v332
        %v420 = vunpack.c.l.b16 %v333
        %v421 = vunpack.c.l.b16 %v334
        %v422 = vunpack.c.l.b16 %v335
        %v423 = vunpack.c.l.b16 %v336
        %v424 = vunpack.c.l.b16 %v337
        %v425 = vunpack.c.l.b16 %v338
        %v426 = vunpack.c.l.b16 %v339
        %v427 = vunpack.c.l.b16 %v340
        %v428 = vunpack.c.l.b16 %v341
        %v429 = vunpack.c.l.b16 %v342
        %v430 = vunpack.c.l.b16 %v343
        %v431 = vpack.c.b16 %v416, %v415
        %v432 = vpack.c.b16 %v418, %v417
        %v433 = vpack.c.b16 %v420, %v419
        %v434 = vpack.c.b16 %v422, %v421
        %v435 = vpack.c.b16 %v424, %v423
        %v436 = vpack.c.b16 %v426, %v425
        %v437 = vpack.c.b16 %v428, %v427
        %v438 = vpack.c.b16 %v430, %v429
        %447 = vmatprep.subr.bf16.mxu0 0
        %448 = vmatpush1.bf16.msra.mxu0 %v438
        %449 = vmatprep.subr.bf16.mxu0 0
        %450 = vmatpush1.bf16.msra.mxu0 %v437
        %451 = vmatprep.subr.bf16.mxu0 0
        %452 = vmatpush1.bf16.msra.mxu0 %v436
        %453 = vmatprep.subr.bf16.mxu0 0
        %454 = vmatpush1.bf16.msra.mxu0 %v435
        %455 = vmatprep.subr.bf16.mxu0 0
        %456 = vmatpush1.bf16.msra.mxu0 %v434
        %457 = vmatprep.subr.bf16.mxu0 0
        %458 = vmatpush1.bf16.msra.mxu0 %v433
        %459 = vmatprep.subr.bf16.mxu0 0
        %460 = vmatpush1.bf16.msra.mxu0 %v432
        %461 = vmatprep.subr.bf16.mxu0 0
        %462 = vmatpush1.bf16.msra.mxu0 %v431
        %463 = vmatprep.subr.bf16.mxu0 0
        %464 = vmatpush2.bf16.msra.mxu0 0
        %465 = vmatprep.subr.bf16.mxu0 0
        %466 = vmatpush2.bf16.msra.mxu0 0
        %467 = vmatprep.subr.bf16.mxu0 0
        %468 = vmatpush2.bf16.msra.mxu0 0
        %469 = vmatprep.subr.bf16.mxu0 0
        %470 = vmatpush2.bf16.msra.mxu0 0
        %471 = vmatprep.subr.bf16.mxu0 0
        %472 = vmatpush2.bf16.msra.mxu0 0
        %473 = vmatprep.subr.bf16.mxu0 0
        %474 = vmatpush2.bf16.msra.mxu0 0
        %475 = vmatprep.subr.bf16.mxu0 0
        %476 = vmatpush2.bf16.msra.mxu0 0
        %477 = vmatprep.subr.bf16.mxu0 0
        %478 = vmatpush2.bf16.msra.mxu0 0
        %479 = vmatprep.mubr.bf16.mxu0 0
        %480 = vmatmul.mubr.bf16.gmra.mxu0 %v383
        %v481 = vpop.f32.mrf.mxu0
        %v482 = vadd.f32 %v349, %v481
        %v483 = vpop.f32.mrf.mxu0
        %v484 = vpop.f32.mrf.mxu0
        %v485 = vadd.f32 %v349, %v484
        %v486 = vpop.f32.mrf.mxu0
        %487 = vmatprep.mubr.bf16.mxu0 0
        %488 = vmatmul.mubr.bf16.gmra.mxu0 %v384
        %v489 = vpop.f32.mrf.mxu0
        %v490 = vadd.f32 %v349, %v489
        %v491 = vpop.f32.mrf.mxu0
        %v492 = vpop.f32.mrf.mxu0
        %v493 = vadd.f32 %v349, %v492
        %v494 = vpop.f32.mrf.mxu0
        %495 = vmatprep.mubr.bf16.mxu0 0
        %496 = vmatmul.mubr.bf16.gmra.mxu0 %v385
        %v497 = vpop.f32.mrf.mxu0
        %v498 = vadd.f32 %v349, %v497
        %v499 = vpop.f32.mrf.mxu0
        %v500 = vpop.f32.mrf.mxu0
        %v501 = vadd.f32 %v349, %v500
        %v502 = vpop.f32.mrf.mxu0
        %503 = vmatprep.mubr.bf16.mxu0 0
        %504 = vmatmul.mubr.bf16.gmra.mxu0 %v386
        %v505 = vpop.f32.mrf.mxu0
        %v506 = vadd.f32 %v349, %v505
        %v507 = vpop.f32.mrf.mxu0
        %v508 = vpop.f32.mrf.mxu0
        %v509 = vadd.f32 %v349, %v508
        %v510 = vpop.f32.mrf.mxu0
        %511 = vmatprep.mubr.bf16.mxu0 0
        %512 = vmatmul.mubr.bf16.gmra.mxu0 %v387
        %v513 = vpop.f32.mrf.mxu0
        %v514 = vadd.f32 %v349, %v513
        %v515 = vpop.f32.mrf.mxu0
        %v516 = vpop.f32.mrf.mxu0
        %v517 = vadd.f32 %v349, %v516
        %v518 = vpop.f32.mrf.mxu0
        %519 = vmatprep.mubr.bf16.mxu0 0
        %520 = vmatmul.mubr.bf16.gmra.mxu0 %v388
        %v521 = vpop.f32.mrf.mxu0
        %v522 = vadd.f32 %v349, %v521
        %v523 = vpop.f32.mrf.mxu0
        %v524 = vpop.f32.mrf.mxu0
        %v525 = vadd.f32 %v349, %v524
        %v526 = vpop.f32.mrf.mxu0
        %527 = vmatprep.mubr.bf16.mxu0 0
        %528 = vmatmul.mubr.bf16.gmra.mxu0 %v389
        %v529 = vpop.f32.mrf.mxu0
        %v530 = vadd.f32 %v349, %v529
        %v531 = vpop.f32.mrf.mxu0
        %v532 = vpop.f32.mrf.mxu0
        %v533 = vadd.f32 %v349, %v532
        %v534 = vpop.f32.mrf.mxu0
        %535 = vmatprep.mubr.bf16.mxu0 0
        %536 = vmatmul.mubr.bf16.gmra.mxu0 %v390
        %v537 = vpop.f32.mrf.mxu0
        %v538 = vadd.f32 %v349, %v537
        %v539 = vpop.f32.mrf.mxu0
        %v540 = vpop.f32.mrf.mxu0
        %v541 = vadd.f32 %v349, %v540
        %v542 = vpop.f32.mrf.mxu0
        %543 = vdwg.mxu0
        %v544 = vmax.f32 %v482, 0.0
        %v545 = vmax.f32 %v485, 0.0
        %v546 = vmax.f32 %v490, 0.0
        %v547 = vmax.f32 %v493, 0.0
        %v548 = vmax.f32 %v498, 0.0
        %v549 = vmax.f32 %v501, 0.0
        %v550 = vmax.f32 %v506, 0.0
        %v551 = vmax.f32 %v509, 0.0
        %v552 = vmax.f32 %v514, 0.0
        %v553 = vmax.f32 %v517, 0.0
        %v554 = vmax.f32 %v522, 0.0
        %v555 = vmax.f32 %v525, 0.0
        %v556 = vmax.f32 %v530, 0.0
        %v557 = vmax.f32 %v533, 0.0
        %v558 = vmax.f32 %v538, 0.0
        %v559 = vmax.f32 %v541, 0.0
        %v560 = vpack.c.bf16 %v545, %v544
        %v561 = vpack.c.bf16 %v547, %v546
        %v562 = vpack.c.bf16 %v549, %v548
        %v563 = vpack.c.bf16 %v551, %v550
        %v564 = vpack.c.bf16 %v553, %v552
        %v565 = vpack.c.bf16 %v555, %v554
        %v566 = vpack.c.bf16 %v557, %v556
        %v567 = vpack.c.bf16 %v559, %v558
        %v568 = vld [vmem:[%s268] sm:$0xf]
        %v569 = vld [vmem:[%s268 + $0x4] sm:$0xf]
        %v570 = vld [vmem:[%s268 + $0x8] sm:$0xf]
        %v571 = vld [vmem:[%s268 + $0xc] sm:$0xf]
        %v572 = vld [vmem:[%s268 + $0x10] sm:$0xf]
        %v573 = vld [vmem:[%s268 + $0x14] sm:$0xf]
        %v574 = vld [vmem:[%s268 + $0x18] sm:$0xf]
        %v575 = vld [vmem:[%s268 + $0x1c] sm:$0xf]
        %v576 = vld [vmem:[%s268 + $0x20] sm:$0xf]
        %v577 = vld [vmem:[%s268 + $0x24] sm:$0xf]
        %v578 = vld [vmem:[%s268 + $0x28] sm:$0xf]
        %v579 = vld [vmem:[%s268 + $0x2c] sm:$0xf]
        %v580 = vld [vmem:[%s268 + $0x30] sm:$0xf]
        %v581 = vld [vmem:[%s268 + $0x34] sm:$0xf]
        %v582 = vld [vmem:[%s268 + $0x38] sm:$0xf]
        %v583 = vld [vmem:[%s268 + $0x3c] sm:$0xf]
        %v600 = vunpack.c.l.b16 %v568
        %v601 = vunpack.c.l.b16 %v569
        %v602 = vunpack.c.l.b16 %v570
        %v603 = vunpack.c.l.b16 %v571
        %v604 = vunpack.c.l.b16 %v572
        %v605 = vunpack.c.l.b16 %v573
        %v606 = vunpack.c.l.b16 %v574
        %v607 = vunpack.c.l.b16 %v575
        %v608 = vunpack.c.l.b16 %v576
        %v609 = vunpack.c.l.b16 %v577
        %v610 = vunpack.c.l.b16 %v578
        %v611 = vunpack.c.l.b16 %v579
        %v612 = vunpack.c.l.b16 %v580
        %v613 = vunpack.c.l.b16 %v581
        %v614 = vunpack.c.l.b16 %v582
        %v615 = vunpack.c.l.b16 %v583
        %v616 = vpack.c.b16 %v601, %v600
        %v617 = vpack.c.b16 %v603, %v602
        %v618 = vpack.c.b16 %v605, %v604
        %v619 = vpack.c.b16 %v607, %v606
        %v620 = vpack.c.b16 %v609, %v608
        %v621 = vpack.c.b16 %v611, %v610
        %v622 = vpack.c.b16 %v613, %v612
        %v623 = vpack.c.b16 %v615, %v614
        %632 = vmatprep.subr.bf16.mxu0 0
        %633 = vmatpush1.bf16.msra.mxu0 %v623
        %634 = vmatprep.subr.bf16.mxu0 0
        %635 = vmatpush1.bf16.msra.mxu0 %v622
        %636 = vmatprep.subr.bf16.mxu0 0
        %637 = vmatpush1.bf16.msra.mxu0 %v621
        %638 = vmatprep.subr.bf16.mxu0 0
        %639 = vmatpush1.bf16.msra.mxu0 %v620
        %640 = vmatprep.subr.bf16.mxu0 0
        %641 = vmatpush1.bf16.msra.mxu0 %v619
        %642 = vmatprep.subr.bf16.mxu0 0
        %643 = vmatpush1.bf16.msra.mxu0 %v618
        %644 = vmatprep.subr.bf16.mxu0 0
        %645 = vmatpush1.bf16.msra.mxu0 %v617
        %646 = vmatprep.subr.bf16.mxu0 0
        %647 = vmatpush1.bf16.msra.mxu0 %v616
        %648 = vmatprep.subr.bf16.mxu0 0
        %649 = vmatpush2.bf16.msra.mxu0 0
        %650 = vmatprep.subr.bf16.mxu0 0
        %651 = vmatpush2.bf16.msra.mxu0 0
        %652 = vmatprep.subr.bf16.mxu0 0
        %653 = vmatpush2.bf16.msra.mxu0 0
        %654 = vmatprep.subr.bf16.mxu0 0
        %655 = vmatpush2.bf16.msra.mxu0 0
        %656 = vmatprep.subr.bf16.mxu0 0
        %657 = vmatpush2.bf16.msra.mxu0 0
        %658 = vmatprep.subr.bf16.mxu0 0
        %659 = vmatpush2.bf16.msra.mxu0 0
        %660 = vmatprep.subr.bf16.mxu0 0
        %661 = vmatpush2.bf16.msra.mxu0 0
        %662 = vmatprep.subr.bf16.mxu0 0
        %663 = vmatpush2.bf16.msra.mxu0 0
        %664 = vmatprep.mubr.bf16.mxu0 0
        %665 = vmatmul.mubr.bf16.gmra.mxu0 %v560
        %v666 = vpop.f32.mrf.mxu0
        %v667 = vadd.f32 0.0, %v666
        %v668 = vpop.f32.mrf.mxu0
        %v669 = vpop.f32.mrf.mxu0
        %v670 = vadd.f32 0.0, %v669
        %v671 = vpop.f32.mrf.mxu0
        %672 = vmatprep.mubr.bf16.mxu0 0
        %673 = vmatmul.mubr.bf16.gmra.mxu0 %v561
        %v674 = vpop.f32.mrf.mxu0
        %v675 = vadd.f32 0.0, %v674
        %v676 = vpop.f32.mrf.mxu0
        %v677 = vpop.f32.mrf.mxu0
        %v678 = vadd.f32 0.0, %v677
        %v679 = vpop.f32.mrf.mxu0
        %680 = vmatprep.mubr.bf16.mxu0 0
        %681 = vmatmul.mubr.bf16.gmra.mxu0 %v562
        %v682 = vpop.f32.mrf.mxu0
        %v683 = vadd.f32 0.0, %v682
        %v684 = vpop.f32.mrf.mxu0
        %v685 = vpop.f32.mrf.mxu0
        %v686 = vadd.f32 0.0, %v685
        %v687 = vpop.f32.mrf.mxu0
        %688 = vmatprep.mubr.bf16.mxu0 0
        %689 = vmatmul.mubr.bf16.gmra.mxu0 %v563
        %v690 = vpop.f32.mrf.mxu0
        %v691 = vadd.f32 0.0, %v690
        %v692 = vpop.f32.mrf.mxu0
        %v693 = vpop.f32.mrf.mxu0
        %v694 = vadd.f32 0.0, %v693
        %v695 = vpop.f32.mrf.mxu0
        %696 = vmatprep.mubr.bf16.mxu0 0
        %697 = vmatmul.mubr.bf16.gmra.mxu0 %v564
        %v698 = vpop.f32.mrf.mxu0
        %v699 = vadd.f32 0.0, %v698
        %v700 = vpop.f32.mrf.mxu0
        %v701 = vpop.f32.mrf.mxu0
        %v702 = vadd.f32 0.0, %v701
        %v703 = vpop.f32.mrf.mxu0
        %704 = vmatprep.mubr.bf16.mxu0 0
        %705 = vmatmul.mubr.bf16.gmra.mxu0 %v565
        %v706 = vpop.f32.mrf.mxu0
        %v707 = vadd.f32 0.0, %v706
        %v708 = vpop.f32.mrf.mxu0
        %v709 = vpop.f32.mrf.mxu0
        %v710 = vadd.f32 0.0, %v709
        %v711 = vpop.f32.mrf.mxu0
        %712 = vmatprep.mubr.bf16.mxu0 0
        %713 = vmatmul.mubr.bf16.gmra.mxu0 %v566
        %v714 = vpop.f32.mrf.mxu0
        %v715 = vadd.f32 0.0, %v714
        %v716 = vpop.f32.mrf.mxu0
        %v717 = vpop.f32.mrf.mxu0
        %v718 = vadd.f32 0.0, %v717
        %v719 = vpop.f32.mrf.mxu0
        %720 = vmatprep.mubr.bf16.mxu0 0
        %721 = vmatmul.mubr.bf16.gmra.mxu0 %v567
        %v722 = vpop.f32.mrf.mxu0
        %v723 = vadd.f32 0.0, %v722
        %v724 = vpop.f32.mrf.mxu0
        %v725 = vpop.f32.mrf.mxu0
        %v726 = vadd.f32 0.0, %v725
        %v727 = vpop.f32.mrf.mxu0
        %728 = vdwg.mxu0
        %v729 = vpack.c.bf16 %v670, %v667
        %v730 = vpack.c.bf16 %v678, %v675
        %v731 = vpack.c.bf16 %v686, %v683
        %v732 = vpack.c.bf16 %v694, %v691
        %v733 = vpack.c.bf16 %v702, %v699
        %v734 = vpack.c.bf16 %v710, %v707
        %v735 = vpack.c.bf16 %v718, %v715
        %v736 = vpack.c.bf16 %v726, %v723
        %v745 = vunpack.c.l.b16 %v729
        %v746 = vunpack.c.h.b16 %v729
        %v747 = vunpack.c.l.b16 %v730
        %v748 = vunpack.c.h.b16 %v730
        %v749 = vunpack.c.l.b16 %v731
        %v750 = vunpack.c.h.b16 %v731
        %v751 = vunpack.c.l.b16 %v732
        %v752 = vunpack.c.h.b16 %v732
        %v753 = vunpack.c.l.b16 %v733
        %v754 = vunpack.c.h.b16 %v733
        %v755 = vunpack.c.l.b16 %v734
        %v756 = vunpack.c.h.b16 %v734
        %v757 = vunpack.c.l.b16 %v735
        %v758 = vunpack.c.h.b16 %v735
        %v759 = vunpack.c.l.b16 %v736
        %v760 = vunpack.c.h.b16 %v736
        %v761 = vpack.c.b16 %v745, %v745
        %v762 = vpack.c.b16 %v746, %v746
        %v763 = vpack.c.b16 %v747, %v747
        %v764 = vpack.c.b16 %v748, %v748
        %v765 = vpack.c.b16 %v749, %v749
        %v766 = vpack.c.b16 %v750, %v750
        %v767 = vpack.c.b16 %v751, %v751
        %v768 = vpack.c.b16 %v752, %v752
        %v769 = vpack.c.b16 %v753, %v753
        %v770 = vpack.c.b16 %v754, %v754
        %v771 = vpack.c.b16 %v755, %v755
        %v772 = vpack.c.b16 %v756, %v756
        %v773 = vpack.c.b16 %v757, %v757
        %v774 = vpack.c.b16 %v758, %v758
        %v775 = vpack.c.b16 %v759, %v759
        %v776 = vpack.c.b16 %v760, %v760
        %793 = vst [vmem:[#allocation2] sm:$0xf] %v761
        %794 = vst [vmem:[#allocation2 + $0x4] sm:$0xf] %v762
        %795 = vst [vmem:[#allocation2 + $0x8] sm:$0xf] %v763
        %796 = vst [vmem:[#allocation2 + $0xc] sm:$0xf] %v764
        %797 = vst [vmem:[#allocation2 + $0x10] sm:$0xf] %v765
        %798 = vst [vmem:[#allocation2 + $0x14] sm:$0xf] %v766
        %799 = vst [vmem:[#allocation2 + $0x18] sm:$0xf] %v767
        %800 = vst [vmem:[#allocation2 + $0x1c] sm:$0xf] %v768
        %801 = vst [vmem:[#allocation2 + $0x20] sm:$0xf] %v769
        %802 = vst [vmem:[#allocation2 + $0x24] sm:$0xf] %v770
        %803 = vst [vmem:[#allocation2 + $0x28] sm:$0xf] %v771
        %804 = vst [vmem:[#allocation2 + $0x2c] sm:$0xf] %v772
        %805 = vst [vmem:[#allocation2 + $0x30] sm:$0xf] %v773
        %806 = vst [vmem:[#allocation2 + $0x34] sm:$0xf] %v774
        %807 = vst [vmem:[#allocation2 + $0x38] sm:$0xf] %v775
        %808 = vst [vmem:[#allocation2 + $0x3c] sm:$0xf] %v776
        %v809 = vld [vmem:[#allocation2] sm:$0xf]
        %v810 = vld [vmem:[#allocation2 + $0x4] sm:$0xf]
        %v811 = vld [vmem:[#allocation2 + $0x8] sm:$0xf]
        %v812 = vld [vmem:[#allocation2 + $0xc] sm:$0xf]
        %v813 = vld [vmem:[#allocation2 + $0x10] sm:$0xf]
        %v814 = vld [vmem:[#allocation2 + $0x14] sm:$0xf]
        %v815 = vld [vmem:[#allocation2 + $0x18] sm:$0xf]
        %v816 = vld [vmem:[#allocation2 + $0x1c] sm:$0xf]
        %v817 = vld [vmem:[#allocation2 + $0x20] sm:$0xf]
        %v818 = vld [vmem:[#allocation2 + $0x24] sm:$0xf]
        %v819 = vld [vmem:[#allocation2 + $0x28] sm:$0xf]
        %v820 = vld [vmem:[#allocation2 + $0x2c] sm:$0xf]
        %v821 = vld [vmem:[#allocation2 + $0x30] sm:$0xf]
        %v822 = vld [vmem:[#allocation2 + $0x34] sm:$0xf]
        %v823 = vld [vmem:[#allocation2 + $0x38] sm:$0xf]
        %v824 = vld [vmem:[#allocation2 + $0x3c] sm:$0xf]
        %v825 = vld [vmem:[%s305] sm:$0x1]
        %v827 = vlaneseq
        %v828 = vshrl.u32 %v827, 7
        %v829 = vsub.s32 0, %v828
        %v830 = vrot.slane %v825, %v829
        %v848 = vunpack.c.l.b16 %v809
        %v849 = vunpack.c.l.b16 %v810
        %v850 = vunpack.c.l.b16 %v811
        %v851 = vunpack.c.l.b16 %v812
        %v852 = vunpack.c.l.b16 %v813
        %v853 = vunpack.c.l.b16 %v814
        %v854 = vunpack.c.l.b16 %v815
        %v855 = vunpack.c.l.b16 %v816
        %v856 = vunpack.c.l.b16 %v817
        %v857 = vunpack.c.l.b16 %v818
        %v858 = vunpack.c.l.b16 %v819
        %v859 = vunpack.c.l.b16 %v820
        %v860 = vunpack.c.l.b16 %v821
        %v861 = vunpack.c.l.b16 %v822
        %v862 = vunpack.c.l.b16 %v823
        %v863 = vunpack.c.l.b16 %v824
        %v864 = vpack.c.b16 %v849, %v848
        %v865 = vpack.c.b16 %v851, %v850
        %v866 = vpack.c.b16 %v853, %v852
        %v867 = vpack.c.b16 %v855, %v854
        %v868 = vpack.c.b16 %v857, %v856
        %v869 = vpack.c.b16 %v859, %v858
        %v870 = vpack.c.b16 %v861, %v860
        %v871 = vpack.c.b16 %v863, %v862
        %880 = vmatprep.subr.bf16.mxu0 0
        %881 = vmatpush1.bf16.msra.mxu0 %v871
        %882 = vmatprep.subr.bf16.mxu0 0
        %883 = vmatpush1.bf16.msra.mxu0 %v870
        %884 = vmatprep.subr.bf16.mxu0 0
        %885 = vmatpush1.bf16.msra.mxu0 %v869
        %886 = vmatprep.subr.bf16.mxu0 0
        %887 = vmatpush1.bf16.msra.mxu0 %v868
        %888 = vmatprep.subr.bf16.mxu0 0
        %889 = vmatpush1.bf16.msra.mxu0 %v867
        %890 = vmatprep.subr.bf16.mxu0 0
        %891 = vmatpush1.bf16.msra.mxu0 %v866
        %892 = vmatprep.subr.bf16.mxu0 0
        %893 = vmatpush1.bf16.msra.mxu0 %v865
        %894 = vmatprep.subr.bf16.mxu0 0
        %895 = vmatpush1.bf16.msra.mxu0 %v864
        %896 = vmatprep.subr.bf16.mxu0 0
        %897 = vmatpush2.bf16.msra.mxu0 0
        %898 = vmatprep.subr.bf16.mxu0 0
        %899 = vmatpush2.bf16.msra.mxu0 0
        %900 = vmatprep.subr.bf16.mxu0 0
        %901 = vmatpush2.bf16.msra.mxu0 0
        %902 = vmatprep.subr.bf16.mxu0 0
        %903 = vmatpush2.bf16.msra.mxu0 0
        %904 = vmatprep.subr.bf16.mxu0 0
        %905 = vmatpush2.bf16.msra.mxu0 0
        %906 = vmatprep.subr.bf16.mxu0 0
        %907 = vmatpush2.bf16.msra.mxu0 0
        %908 = vmatprep.subr.bf16.mxu0 0
        %909 = vmatpush2.bf16.msra.mxu0 0
        %910 = vmatprep.subr.bf16.mxu0 0
        %911 = vmatpush2.bf16.msra.mxu0 0
        %912 = vmatprep.mubr.bf16.mxu0 0
        %913 = vmatmul.mubr.bf16.gmra.mxu0 %v383
        %v914 = vpop.f32.mrf.mxu0
        %v915 = vadd.f32 %v830, %v914
        %v916 = vpop.f32.mrf.mxu0
        %v917 = vpop.f32.mrf.mxu0
        %v918 = vadd.f32 %v830, %v917
        %v919 = vpop.f32.mrf.mxu0
        %920 = vmatprep.mubr.bf16.mxu0 0
        %921 = vmatmul.mubr.bf16.gmra.mxu0 %v384
        %v922 = vpop.f32.mrf.mxu0
        %v923 = vadd.f32 %v830, %v922
        %v924 = vpop.f32.mrf.mxu0
        %v925 = vpop.f32.mrf.mxu0
        %v926 = vadd.f32 %v830, %v925
        %v927 = vpop.f32.mrf.mxu0
        %928 = vmatprep.mubr.bf16.mxu0 0
        %929 = vmatmul.mubr.bf16.gmra.mxu0 %v385
        %v930 = vpop.f32.mrf.mxu0
        %v931 = vadd.f32 %v830, %v930
        %v932 = vpop.f32.mrf.mxu0
        %v933 = vpop.f32.mrf.mxu0
        %v934 = vadd.f32 %v830, %v933
        %v935 = vpop.f32.mrf.mxu0
        %936 = vmatprep.mubr.bf16.mxu0 0
        %937 = vmatmul.mubr.bf16.gmra.mxu0 %v386
        %v938 = vpop.f32.mrf.mxu0
        %v939 = vadd.f32 %v830, %v938
        %v940 = vpop.f32.mrf.mxu0
        %v941 = vpop.f32.mrf.mxu0
        %v942 = vadd.f32 %v830, %v941
        %v943 = vpop.f32.mrf.mxu0
        %944 = vmatprep.mubr.bf16.mxu0 0
        %945 = vmatmul.mubr.bf16.gmra.mxu0 %v387
        %v946 = vpop.f32.mrf.mxu0
        %v947 = vadd.f32 %v830, %v946
        %v948 = vpop.f32.mrf.mxu0
        %v949 = vpop.f32.mrf.mxu0
        %v950 = vadd.f32 %v830, %v949
        %v951 = vpop.f32.mrf.mxu0
        %952 = vmatprep.mubr.bf16.mxu0 0
        %953 = vmatmul.mubr.bf16.gmra.mxu0 %v388
        %v954 = vpop.f32.mrf.mxu0
        %v955 = vadd.f32 %v830, %v954
        %v956 = vpop.f32.mrf.mxu0
        %v957 = vpop.f32.mrf.mxu0
        %v958 = vadd.f32 %v830, %v957
        %v959 = vpop.f32.mrf.mxu0
        %960 = vmatprep.mubr.bf16.mxu0 0
        %961 = vmatmul.mubr.bf16.gmra.mxu0 %v389
        %v962 = vpop.f32.mrf.mxu0
        %v963 = vadd.f32 %v830, %v962
        %v964 = vpop.f32.mrf.mxu0
        %v965 = vpop.f32.mrf.mxu0
        %v966 = vadd.f32 %v830, %v965
        %v967 = vpop.f32.mrf.mxu0
        %968 = vmatprep.mubr.bf16.mxu0 0
        %969 = vmatmul.mubr.bf16.gmra.mxu0 %v390
        %v970 = vpop.f32.mrf.mxu0
        %v971 = vadd.f32 %v830, %v970
        %v972 = vpop.f32.mrf.mxu0
        %v973 = vpop.f32.mrf.mxu0
        %v974 = vadd.f32 %v830, %v973
        %v975 = vpop.f32.mrf.mxu0
        %976 = vdwg.mxu0
        %977 = vst [vmem:[%s310] sm:$0xff] %v915
        %978 = vst [vmem:[%s310 + $0x8] sm:$0xff] %v918
        %979 = vst [vmem:[%s310 + $0x10] sm:$0xff] %v923
        %980 = vst [vmem:[%s310 + $0x18] sm:$0xff] %v926
        %981 = vst [vmem:[%s310 + $0x20] sm:$0xff] %v931
        %982 = vst [vmem:[%s310 + $0x28] sm:$0xff] %v934
        %983 = vst [vmem:[%s310 + $0x30] sm:$0xff] %v939
        %984 = vst [vmem:[%s310 + $0x38] sm:$0xff] %v942
        %985 = vst [vmem:[%s310 + $0x40] sm:$0xff] %v947
        %986 = vst [vmem:[%s310 + $0x48] sm:$0xff] %v950
        %987 = vst [vmem:[%s310 + $0x50] sm:$0xff] %v955
        %988 = vst [vmem:[%s310 + $0x58] sm:$0xff] %v958
        %989 = vst [vmem:[%s310 + $0x60] sm:$0xff] %v963
        %990 = vst [vmem:[%s310 + $0x68] sm:$0xff] %v966
        %991 = vst [vmem:[%s310 + $0x70] sm:$0xff] %v971
        %992 = vst [vmem:[%s310 + $0x78] sm:$0xff] %v974
        %p993 = scmp.lt.s32.totalorder %s20, 2
        %s994 = scalar_select %p993, %s20, 2
        %s995 = smul.addr %s994, 16
        %s996 = smul.addr %s995, 8
        %s997 = scalar_lea.vmem %s5, %s996
        // Predicated region
        $region53: #{gcn_forward.1} parent=39 // pred_check
          %p998 = pneg %p158
        $region54: #{gcn_forward.1} parent=39 // pred_check_branch
          %1000 = sbr.rel (%p998) target = $region56
        $region55: #{gcn_forward.1} parent=39 // pred_region
          _
        $region56: #{gcn_forward.1} parent=39 // pred_fallthru
          _
      $region40: #{gcn_forward.1} parent=5 // pred_fallthru
        _
      %p1001 = scmp.le.s32.totalorder 2, %s15
      // Predicated region
      $region57: #{gcn_forward.1} parent=5 // pred_check
        %p1002 = pneg %p1001
      $region58: #{gcn_forward.1} parent=5 // pred_check_branch
        %1004 = sbr.rel (%p1002) target = $region60
      $region59: #{gcn_forward.1} parent=5 // pred_region
        %s1005 = ssub.s32 %s15, 2
        // Predicated region
        $region61: #{gcn_forward.1} parent=59 // pred_check
          %p1006 = pneg %p164
        $region62: #{gcn_forward.1} parent=59 // pred_check_branch
          %1008 = sbr.rel (%p1006) target = $region64
        $region63: #{gcn_forward.1} parent=59 // pred_region
          %p1009 = scmp.lt.s32.totalorder %s21, 2
          %s1010 = scalar_select %p1009, %s21, 2
          %s1011 = smul.addr %s1010, 16
          %s1012 = smul.addr %s1011, 8
          %s1013 = scalar_lea.vmem %s5, %s1012
        $region64: #{gcn_forward.1} parent=59 // pred_fallthru
          _
      $region60: #{gcn_forward.1} parent=5 // pred_fallthru
        _
    $region6: #{gcn_forward.1} parent=1 // loop_footer
      %s19 = sadd.s32 1, %s15
    $region7: #{gcn_forward.1} parent=1 // loop_footer_branch
      %14 = sbr.rel target = $region3
    $region8: #{gcn_forward.1} parent=1 // loop_exit
      _
    %1014 = vsyncpa [#allocation4], 1
    %s1015 = scalar_lea.sflag [#allocation4], 1
    %1016 = vsyncpa %s1015, 1
    %1017 = vsyncpa [#allocation6], 1

</llo_original>
